<compile_context>
chip_gen: v5e
topology: v5e:2x2
jax: 0.10.0
libtpu: 0.0.40
codegen_flags: <defaults>
</compile_context>

<pallas_src>
import jax
import jax.numpy as jnp
from jax.experimental import pallas as pl
from jax.experimental.pallas import tpu as pltpu

_SUBLANE = 8


def _round_up(x: int, m: int) -> int:
    return (x + m - 1) // m * m


def _choose_tb(batch: int, tb_req: int) -> int:
    """Pick a batch tile: sublane-aligned, large, and >=2 grid steps if possible."""
    b_pad = _round_up(batch, _SUBLANE)          # minimal sublane-aligned batch
    # Prefer multiples of 16 (bf16 sublane packing); clamp to the batch.
    tb = max(_SUBLANE, min(_round_up(tb_req, 16), b_pad))
    # Guarantee at least 2 grid steps when the batch allows it so the
    # "parallel" batch axis can shard across v7x's two TensorCores.
    if b_pad >= 2 * _SUBLANE:
        tb = min(tb, _round_up((b_pad + 1) // 2, _SUBLANE))
    return _round_up(tb, _SUBLANE)


def classifier_kernel(x_ref, w1_ref, b1_ref, w2_ref, b2_ref, o_ref):
    """Fused classifier head on one (tb, H) batch tile.

    x_ref : (tb, H)  f32   (cast to bf16 in-kernel)
    w1_ref: (H, Hm)  bf16    b1_ref: (1, Hm) f32
    w2_ref: (Hm, L)  bf16    b2_ref: (1, L)  f32
    o_ref : (tb, L)  f32
    """
    # In-kernel bf16 cast of the activations: keeps the HBM stream a single
    # un-padded f32 read; the cast itself is free VPU work.
    x = x_ref[...].astype(jnp.bfloat16)
    # Layer 1 on the MXU: bf16 operands, f32 accumulation.
    h = jnp.dot(x, w1_ref[...], preferred_element_type=jnp.float32)
    # Bias + ReLU on the VPU.
    h = jnp.maximum(h + b1_ref[...], 0.0)
    # Dropout(p=0.1): identity in inference mode (module.eval()).
    # Layer 2 on the MXU.
    y = jnp.dot(h.astype(jnp.bfloat16), w2_ref[...],
                preferred_element_type=jnp.float32)
    o_ref[...] = (y + b2_ref[...]).astype(o_ref.dtype)


def classifier_forward(pooled, w1, b1, w2, b2, *, tb: int = 1024):
    """pooled: (B, hidden) f32; returns logits (B, n_label) f32."""
    B, H = pooled.shape
    Hm = w1.shape[1]
    L = w2.shape[1]

    tb = _choose_tb(B, tb)
    grid = (pl.cdiv(B, tb),)

    # One-time (tiny) parameter packing only — no activation pre-pass.
    w1b = w1.astype(jnp.bfloat16)
    w2b = w2.astype(jnp.bfloat16)
    b1f = b1.astype(jnp.float32).reshape(1, Hm)
    b2f = b2.astype(jnp.float32).reshape(1, L)

    cost = pl.CostEstimate(
        flops=2 * B * H * Hm + 2 * B * Hm * L,
        transcendentals=0,
        bytes_accessed=(B * H * 4            # x read (f32)
                        + B * L * 4          # logits write (f32)
                        + H * Hm * 2 + Hm * L * 2   # bf16 weights (read once)
                        + (Hm + L) * 4),     # f32 biases
    )

    return pl.pallas_call(
        classifier_kernel,
        out_shape=jax.ShapeDtypeStruct((B, L), jnp.float32),
        grid=grid,
        in_specs=[
            # Activation stream: tiled over the batch axis (double-buffered).
            # H equals the full array dim, so no lane padding is required.
            pl.BlockSpec((tb, H), lambda i: (i, 0)),
            # Weights / biases: constant index_maps -> VMEM-resident across steps.
            pl.BlockSpec((H, Hm), lambda i: (0, 0)),
            pl.BlockSpec((1, Hm), lambda i: (0, 0)),
            pl.BlockSpec((Hm, L), lambda i: (0, 0)),
            pl.BlockSpec((1, L), lambda i: (0, 0)),
        ],
        # Un-padded logits block: L equals the full array dim -> 16x less
        # writeback than a 128-lane-padded slab, and no wrapper-side slice.
        out_specs=pl.BlockSpec((tb, L), lambda i: (i, 0)),
        compiler_params=pltpu.CompilerParams(
            dimension_semantics=("parallel",)),
        cost_estimate=cost,
    )(pooled.astype(jnp.float32), w1b, b1f, w2b, b2f)


def reference_forward(pooled, w1, b1, w2, b2):
    """Pure-JAX reference mirroring the kernel numerics (bf16 ops, f32 accum)."""
    xb = pooled.astype(jnp.bfloat16)
    w1b = w1.astype(jnp.bfloat16)
    w2b = w2.astype(jnp.bfloat16)
    h = jnp.maximum(
        jnp.dot(xb, w1b, preferred_element_type=jnp.float32) + b1, 0.0)
    return jnp.dot(h.astype(jnp.bfloat16), w2b,
                   preferred_element_type=jnp.float32) + b2


if __name__ == "__main__":
    # Small synthetic shapes consistent with the module's forward:
    #   hidden_size=32, linear_layer_hidden_size=32, n_label=8.
    # batch=18 with the default tb heuristic gives tb=16 -> grid=(2,), which
    # exercises multi-step batch tiling plus boundary-block padding on both
    # the read and the (masked) write.
    batch = 18
    hidden_size = 32
    linear_hidden = 32
    n_label = 8

    key = jax.random.PRNGKey(0)
    k_pool, k_w1, k_b1, k_w2, k_b2 = jax.random.split(key, 5)

    # Stand-in for BERT pooler_output (tanh-bounded like the real pooler).
    pooled = jnp.tanh(
        jax.random.normal(k_pool, (batch, hidden_size), dtype=jnp.float32))

    # Deterministic parameter init (shapes from nn.Linear in __init__).
    w1 = 0.1 * jax.random.normal(k_w1, (hidden_size, linear_hidden),
                                 dtype=jnp.float32)
    b1 = 0.1 * jax.random.normal(k_b1, (1, linear_hidden), dtype=jnp.float32)
    w2 = 0.1 * jax.random.normal(k_w2, (linear_hidden, n_label),
                                 dtype=jnp.float32)
    b2 = 0.1 * jax.random.normal(k_b2, (1, n_label), dtype=jnp.float32)

    logits = classifier_forward(pooled, w1, b1, w2, b2)
    logits = jax.block_until_ready(logits)

    ref = reference_forward(pooled, w1, b1, w2, b2)
    assert logits.shape == (batch, n_label)
    assert jnp.allclose(logits, ref, atol=5e-3, rtol=5e-3)

    print("KERNEL_OK")
</pallas_src>

<mosaic_0001>
module attributes {stable_mosaic.version = 11 : i64} {
  func.func @classifier_kernel(%arg0: i32, %arg1: memref<16x32xf32, #tpu.memory_space<vmem>>, %arg2: memref<32x32xbf16, #tpu.memory_space<vmem>>, %arg3: memref<1x32xf32, #tpu.memory_space<vmem>>, %arg4: memref<32x8xbf16, #tpu.memory_space<vmem>>, %arg5: memref<1x8xf32, #tpu.memory_space<vmem>>, %arg6: memref<16x8xf32, #tpu.memory_space<vmem>>) attributes {dimension_semantics = [#tpu.dimension_semantics<parallel>], iteration_bounds = array<i64: 2>, scalar_prefetch = 0 : i64, scratch_operands = 0 : i64, tpu.core_type = #tpu.core_type<tc>, window_params = [{transform_indices = @transform_0, window_bounds = array<i64: 16, 32>}, {pipeline_mode = #tpu.pipeline_mode<synchronous>, transform_indices = @transform_1, window_bounds = array<i64: 32, 32>}, {pipeline_mode = #tpu.pipeline_mode<synchronous>, transform_indices = @transform_2, window_bounds = array<i64: 1, 32>}, {pipeline_mode = #tpu.pipeline_mode<synchronous>, transform_indices = @transform_3, window_bounds = array<i64: 32, 8>}, {pipeline_mode = #tpu.pipeline_mode<synchronous>, transform_indices = @transform_4, window_bounds = array<i64: 1, 8>}, {transform_indices = @transform_5, window_bounds = array<i64: 16, 8>}]} {
    %c0 = arith.constant 0 : index
    %c0_0 = arith.constant 0 : index
    %0 = vector.load %arg1[%c0, %c0_0] : memref<16x32xf32, #tpu.memory_space<vmem>>, vector<16x32xf32>
    %1 = arith.truncf %0 : vector<16x32xf32> to vector<16x32xbf16>
    %c0_1 = arith.constant 0 : index
    %c0_2 = arith.constant 0 : index
    %2 = vector.load %arg2[%c0_1, %c0_2] : memref<32x32xbf16, #tpu.memory_space<vmem>>, vector<32x32xbf16>
    %cst = arith.constant dense<0.000000e+00> : vector<16x32xf32>
    %3 = tpu.matmul %1, %2, %cst {dimension_numbers = #tpu.dot_dimension_numbers<[1], [0], [0], [1], [0, 0, 1, 1], [], []>} : vector<16x32xbf16>, vector<32x32xbf16>, vector<16x32xf32> -> vector<16x32xf32>
    %c0_3 = arith.constant 0 : index
    %c0_4 = arith.constant 0 : index
    %4 = vector.load %arg3[%c0_3, %c0_4] : memref<1x32xf32, #tpu.memory_space<vmem>>, vector<1x32xf32>
    %5 = vector.broadcast %4 : vector<1x32xf32> to vector<16x32xf32>
    %6 = arith.addf %3, %5 : vector<16x32xf32>
    %cst_5 = arith.constant 0.000000e+00 : f32
    %7 = vector.broadcast %cst_5 : f32 to vector<16x32xf32>
    %8 = arith.maximumf %6, %7 : vector<16x32xf32>
    %9 = arith.truncf %8 : vector<16x32xf32> to vector<16x32xbf16>
    %c0_6 = arith.constant 0 : index
    %c0_7 = arith.constant 0 : index
    %10 = vector.load %arg4[%c0_6, %c0_7] : memref<32x8xbf16, #tpu.memory_space<vmem>>, vector<32x8xbf16>
    %cst_8 = arith.constant dense<0.000000e+00> : vector<16x8xf32>
    %11 = tpu.matmul %9, %10, %cst_8 {dimension_numbers = #tpu.dot_dimension_numbers<[1], [0], [0], [1], [0, 0, 1, 1], [], []>} : vector<16x32xbf16>, vector<32x8xbf16>, vector<16x8xf32> -> vector<16x8xf32>
    %c0_9 = arith.constant 0 : index
    %c0_10 = arith.constant 0 : index
    %12 = vector.load %arg5[%c0_9, %c0_10] : memref<1x8xf32, #tpu.memory_space<vmem>>, vector<1x8xf32>
    %13 = vector.broadcast %12 : vector<1x8xf32> to vector<16x8xf32>
    %14 = arith.addf %11, %13 : vector<16x8xf32>
    %c0_11 = arith.constant 0 : index
    %c0_12 = arith.constant 0 : index
    %15 = vector.load %arg6[%c0_11, %c0_12] : memref<16x8xf32, #tpu.memory_space<vmem>>, vector<16x8xf32>
    tpu.vector_store %arg6[%c0_11, %c0_12], %14 {strides = array<i32>} : memref<16x8xf32, #tpu.memory_space<vmem>>, vector<16x8xf32>,
    return
  }
  func.func @transform_0(%arg0: i32) -> (i32, i32) {
    %c0_i32 = arith.constant 0 : i32
    %c0_i32_0 = arith.constant 0 : i32
    return %arg0, %c0_i32 : i32, i32
  }
  func.func @transform_1(%arg0: i32) -> (i32, i32) {
    %c0_i32 = arith.constant 0 : i32
    %c0_i32_0 = arith.constant 0 : i32
    %c0_i32_1 = arith.constant 0 : i32
    return %c0_i32, %c0_i32_0 : i32, i32
  }
  func.func @transform_2(%arg0: i32) -> (i32, i32) {
    %c0_i32 = arith.constant 0 : i32
    %c0_i32_0 = arith.constant 0 : i32
    %c0_i32_1 = arith.constant 0 : i32
    return %c0_i32, %c0_i32_0 : i32, i32
  }
  func.func @transform_3(%arg0: i32) -> (i32, i32) {
    %c0_i32 = arith.constant 0 : i32
    %c0_i32_0 = arith.constant 0 : i32
    %c0_i32_1 = arith.constant 0 : i32
    return %c0_i32, %c0_i32_0 : i32, i32
  }
  func.func @transform_4(%arg0: i32) -> (i32, i32) {
    %c0_i32 = arith.constant 0 : i32
    %c0_i32_0 = arith.constant 0 : i32
    %c0_i32_1 = arith.constant 0 : i32
    return %c0_i32, %c0_i32_0 : i32, i32
  }
  func.func @transform_5(%arg0: i32) -> (i32, i32) {
    %c0_i32 = arith.constant 0 : i32
    %c0_i32_0 = arith.constant 0 : i32
    return %arg0, %c0_i32 : i32, i32
  }
}

</mosaic_0001>

<llo_original>
// kernel: tpu_custom_call.1
$region0: #{tpu_custom_call.1}
  #allocation0 [shape = 'u32[]', space=smem, size = 0x4, offset = 0x4, fixed_abs, tag = 'smem constant byte address 0x4 - core index']
  #allocation1 [shape = 'u32[72,128]{1,0:T(1,128)}', space=vmem, size = 0x9000, scoped, tag = 'internal scratch']
  %s0 = inlined_call_operand.hbm [shape: f32[18,32], index: 0, kind: input, shape index: {}]
  %s1 = inlined_call_operand.vmem [shape: bf16[32,32], index: 1, kind: input, shape index: {}]
  %s2 = inlined_call_operand.vmem [shape: f32[1,32], index: 2, kind: input, shape index: {}]
  %s3 = inlined_call_operand.vmem [shape: bf16[32,8], index: 3, kind: input, shape index: {}]
  %s4 = inlined_call_operand.vmem [shape: f32[1,8], index: 4, kind: input, shape index: {}]
  %s5 = inlined_call_operand.vmem [shape: f32[18,8], index: 5, kind: output, shape index: {}]
  %s6 = sld [smem:[#allocation0]]
  $region105: #{tpu_custom_call.1} parent=0
    _
  %s8 = ssub.s32 1, %s6
  %s9 = scalar_select 0, %s8, %s6
  $region1: #{tpu_custom_call.1} parent=0
    #allocation2 [shape = 'u8[16384]{0}', space=vmem, size = 0x4000, scoped, tag = 'input window, operand 0']
    #allocation3 [shape = 's32[2]{0}', space=sflag, size = 0x8, scoped, tag = 'scoped memory for tpu_custom_call.1']
    #allocation4 [shape = 'u8[16384]{0}', space=vmem, size = 0x4000, scoped, tag = 'output window, operand 0']
    %10 = vsyncpa [#allocation3], 0
    %s11 = scalar_lea.sflag [#allocation3], 1
    %12 = vsyncpa %s11, 0
    loop: start=0, step=1, limit=4
    $region2: #{tpu_custom_call.1} parent=1 // loop_pre_header
      _
    $region3: #{tpu_custom_call.1} parent=1 // loop_header
      %s14 = sphi 0, %s18
      %p15 = scmp.ge.s32.totalorder %s14, 4
      %s24 = sphi 0, %s26
      %s27 = sphi 0, %s24
      %s28 = sphi 0, %s27
      %s44 = sphi 0, %s28
      %s48 = sphi 0, %s48
      %s50 = sphi 0, %s48
      %s51 = sphi 0, %s50
      %s65 = sphi 0, %s51
      %s69 = sphi 0, %s69
      %s71 = sphi 0, %s69
      %s72 = sphi 0, %s71
      %s86 = sphi 0, %s72
      %s90 = sphi 0, %s90
      %s92 = sphi 0, %s90
      %s93 = sphi 0, %s92
      %s107 = sphi 0, %s93
      %s111 = sphi 0, %s111
      %s113 = sphi 0, %s111
      %s114 = sphi 0, %s113
      %s128 = sphi 0, %s114
      %s134 = sphi 0, %s136
      %s137 = sphi 0, %s134
      %s138 = sphi 0, %s137
      %s154 = sphi 0, %s138
    $region4: #{tpu_custom_call.1} parent=1 // loop_header_branch
      %17 = sbr.rel (%p15) target = $region8
    $region5: #{tpu_custom_call.1} parent=1 // loop_body
      %s19 = ssub.s32 %s14, 1
      %s20 = ssub.s32 %s14, 2
      %s21 = sadd.s32 %s14, 1
      %s22 = ssub.s32 %s14, %s21
      %p23 = scmp.eq.s32.totalorder %s22, 0
      %s25 = sadd.s32 %s24, 1
      %s26 = scalar_select %p23, %s24, %s25
      %p29 = pneg %p23
      %p30 = scmp.eq.s32.totalorder %s14, 1
      %p31 = por %p29, %p30
      %p32 = scmp.ne.s32.totalorder %s24, %s27
      %p33 = scmp.eq.s32.totalorder %s14, 0
      %p34 = por %p32, %p33
      %p35 = scmp.ne.s32.totalorder %s24, %s27
      %p36 = scmp.eq.s32.totalorder %s19, 1
      %p37 = por %p35, %p36
      %p38 = scmp.ne.s32.totalorder %s27, %s28
      %p39 = scmp.eq.s32.totalorder %s19, 0
      %p40 = por %p38, %p39
      %p41 = scmp.ne.s32.totalorder %s27, %s28
      %p42 = scmp.eq.s32.totalorder %s20, 1
      %p43 = por %p41, %p42
      %p45 = scmp.ne.s32.totalorder %s28, %s44
      %p46 = scmp.eq.s32.totalorder %s20, 0
      %p47 = por %p45, %p46
      %s49 = sadd.s32 %s48, 1
      %p52 = scmp.eq.s32.totalorder %s14, 1
      %p53 = scmp.ne.s32.totalorder %s48, %s50
      %p54 = scmp.eq.s32.totalorder %s14, 0
      %p55 = por %p53, %p54
      %p56 = scmp.ne.s32.totalorder %s48, %s50
      %p57 = scmp.eq.s32.totalorder %s19, 1
      %p58 = por %p56, %p57
      %p59 = scmp.ne.s32.totalorder %s50, %s51
      %p60 = scmp.eq.s32.totalorder %s19, 0
      %p61 = por %p59, %p60
      %p62 = scmp.ne.s32.totalorder %s50, %s51
      %p63 = scmp.eq.s32.totalorder %s20, 1
      %p64 = por %p62, %p63
      %p66 = scmp.ne.s32.totalorder %s51, %s65
      %p67 = scmp.eq.s32.totalorder %s20, 0
      %p68 = por %p66, %p67
      %s70 = sadd.s32 %s69, 1
      %p73 = scmp.eq.s32.totalorder %s14, 1
      %p74 = scmp.ne.s32.totalorder %s69, %s71
      %p75 = scmp.eq.s32.totalorder %s14, 0
      %p76 = por %p74, %p75
      %p77 = scmp.ne.s32.totalorder %s69, %s71
      %p78 = scmp.eq.s32.totalorder %s19, 1
      %p79 = por %p77, %p78
      %p80 = scmp.ne.s32.totalorder %s71, %s72
      %p81 = scmp.eq.s32.totalorder %s19, 0
      %p82 = por %p80, %p81
      %p83 = scmp.ne.s32.totalorder %s71, %s72
      %p84 = scmp.eq.s32.totalorder %s20, 1
      %p85 = por %p83, %p84
      %p87 = scmp.ne.s32.totalorder %s72, %s86
      %p88 = scmp.eq.s32.totalorder %s20, 0
      %p89 = por %p87, %p88
      %s91 = sadd.s32 %s90, 1
      %p94 = scmp.eq.s32.totalorder %s14, 1
      %p95 = scmp.ne.s32.totalorder %s90, %s92
      %p96 = scmp.eq.s32.totalorder %s14, 0
      %p97 = por %p95, %p96
      %p98 = scmp.ne.s32.totalorder %s90, %s92
      %p99 = scmp.eq.s32.totalorder %s19, 1
      %p100 = por %p98, %p99
      %p101 = scmp.ne.s32.totalorder %s92, %s93
      %p102 = scmp.eq.s32.totalorder %s19, 0
      %p103 = por %p101, %p102
      %p104 = scmp.ne.s32.totalorder %s92, %s93
      %p105 = scmp.eq.s32.totalorder %s20, 1
      %p106 = por %p104, %p105
      %p108 = scmp.ne.s32.totalorder %s93, %s107
      %p109 = scmp.eq.s32.totalorder %s20, 0
      %p110 = por %p108, %p109
      %s112 = sadd.s32 %s111, 1
      %p115 = scmp.eq.s32.totalorder %s14, 1
      %p116 = scmp.ne.s32.totalorder %s111, %s113
      %p117 = scmp.eq.s32.totalorder %s14, 0
      %p118 = por %p116, %p117
      %p119 = scmp.ne.s32.totalorder %s111, %s113
      %p120 = scmp.eq.s32.totalorder %s19, 1
      %p121 = por %p119, %p120
      %p122 = scmp.ne.s32.totalorder %s113, %s114
      %p123 = scmp.eq.s32.totalorder %s19, 0
      %p124 = por %p122, %p123
      %p125 = scmp.ne.s32.totalorder %s113, %s114
      %p126 = scmp.eq.s32.totalorder %s20, 1
      %p127 = por %p125, %p126
      %p129 = scmp.ne.s32.totalorder %s114, %s128
      %p130 = scmp.eq.s32.totalorder %s20, 0
      %p131 = por %p129, %p130
      %s132 = ssub.s32 %s14, %s21
      %p133 = scmp.eq.s32.totalorder %s132, 0
      %s135 = sadd.s32 %s134, 1
      %s136 = scalar_select %p133, %s134, %s135
      %p139 = pneg %p133
      %p140 = scmp.eq.s32.totalorder %s14, 1
      %p141 = por %p139, %p140
      %p142 = scmp.ne.s32.totalorder %s134, %s137
      %p143 = scmp.eq.s32.totalorder %s14, 0
      %p144 = por %p142, %p143
      %p145 = scmp.ne.s32.totalorder %s134, %s137
      %p146 = scmp.eq.s32.totalorder %s19, 1
      %p147 = por %p145, %p146
      %p148 = scmp.ne.s32.totalorder %s137, %s138
      %p149 = scmp.eq.s32.totalorder %s19, 0
      %p150 = por %p148, %p149
      %p151 = scmp.ne.s32.totalorder %s137, %s138
      %p152 = scmp.eq.s32.totalorder %s20, 1
      %p153 = por %p151, %p152
      %p155 = scmp.ne.s32.totalorder %s138, %s154
      %p156 = scmp.eq.s32.totalorder %s20, 0
      %p157 = por %p155, %p156
      %p158 = scmp.le.s32.totalorder 1, %s14
      %p159 = scmp.lt.s32.totalorder %s14, 3
      %p160 = pnand %p158, %p159
      %p161 = pneg %p160
      // Predicated region
      $region9: #{tpu_custom_call.1} parent=5 // pred_check
        _
      $region10: #{tpu_custom_call.1} parent=5 // pred_check_branch
        %163 = sbr.rel (%p160) target = $region12
      $region11: #{tpu_custom_call.1} parent=5 // pred_region
        %s164 = ssub.s32 %s14, 1
        // Predicated region
        $region13: #{tpu_custom_call.1} parent=11 // pred_check
          %p165 = pneg %p61
        $region14: #{tpu_custom_call.1} parent=11 // pred_check_branch
          %167 = sbr.rel (%p165) target = $region16
        $region15: #{tpu_custom_call.1} parent=11 // pred_region
          _
        $region16: #{tpu_custom_call.1} parent=11 // pred_fallthru
          _
        // Predicated region
        $region17: #{tpu_custom_call.1} parent=11 // pred_check
          %p168 = pneg %p82
        $region18: #{tpu_custom_call.1} parent=11 // pred_check_branch
          %170 = sbr.rel (%p168) target = $region20
        $region19: #{tpu_custom_call.1} parent=11 // pred_region
          _
        $region20: #{tpu_custom_call.1} parent=11 // pred_fallthru
          _
        // Predicated region
        $region21: #{tpu_custom_call.1} parent=11 // pred_check
          %p171 = pneg %p103
        $region22: #{tpu_custom_call.1} parent=11 // pred_check_branch
          %173 = sbr.rel (%p171) target = $region24
        $region23: #{tpu_custom_call.1} parent=11 // pred_region
          _
        $region24: #{tpu_custom_call.1} parent=11 // pred_fallthru
          _
        // Predicated region
        $region25: #{tpu_custom_call.1} parent=11 // pred_check
          %p174 = pneg %p124
        $region26: #{tpu_custom_call.1} parent=11 // pred_check_branch
          %176 = sbr.rel (%p174) target = $region28
        $region27: #{tpu_custom_call.1} parent=11 // pred_region
          _
        $region28: #{tpu_custom_call.1} parent=11 // pred_fallthru
          _
      $region12: #{tpu_custom_call.1} parent=5 // pred_fallthru
        _
      %p177 = scmp.lt.s32.totalorder %s14, 2
      // Predicated region
      $region29: #{tpu_custom_call.1} parent=5 // pred_check
        %p178 = pneg %p177
      $region30: #{tpu_custom_call.1} parent=5 // pred_check_branch
        %180 = sbr.rel (%p178) target = $region32
      $region31: #{tpu_custom_call.1} parent=5 // pred_region
        // Predicated region
        $region33: #{tpu_custom_call.1} parent=31 // pred_check
          %p181 = pneg %p34
        $region34: #{tpu_custom_call.1} parent=31 // pred_check_branch
          %183 = sbr.rel (%p181) target = $region36
        $region35: #{tpu_custom_call.1} parent=31 // pred_region
          %s184 = sand.u32 %s24, 1
          %s185 = scalar_lea.sflag [#allocation3], %s184
          %s186 = sand.u32 %s24, 1
          %s187 = smul.addr %s186, 16
          %s188 = scalar_lea.vmem [#allocation2], %s187
          %s189 = smul.u32 2, %s14
          %s190 = ssub.s32 3, %s189
          %p191 = scmp.lt.s32.totalorder %s190, 2
          %s192 = scalar_select %p191, %s190, 2
          %s193 = smul.u32 8, %s192
          %s194 = ssub.s32 16, %s193
          %s195 = sshll.u32 %s194, 4
          %196 = vsyncadd %s185, %s195
          %p197 = scmp.ne.s32.totalorder 0, %s193
          %s198 = smul.addr %s189, 8
          %s199 = scalar_lea.hbm %s0, %s198
          %s200 = smul.u32 8, %s192
          %s201 = sshll.u32 %s199, 4
          %s202 = int_to_ptr.hbm [resolvable:$true] %s201
          %s203 = sshll.u32 %s188, 4
          %s204 = int_to_ptr.vmem [resolvable:$true] %s203
          %s205 = sshll.u32 %s200, 4
          %209 = dma.hbm_to_vmem [thread:$0]  (%p197), %s202, %s205, %s204, %s185, 128, 128, 8
        $region36: #{tpu_custom_call.1} parent=31 // pred_fallthru
          _
      $region32: #{tpu_custom_call.1} parent=5 // pred_fallthru
        _
      %p210 = scmp.le.s32.totalorder 1, %s14
      %p211 = scmp.lt.s32.totalorder %s14, 3
      %p212 = pnand %p210, %p211
      %p213 = pneg %p212
      // Predicated region
      $region37: #{tpu_custom_call.1} parent=5 // pred_check
        _
      $region38: #{tpu_custom_call.1} parent=5 // pred_check_branch
        %215 = sbr.rel (%p212) target = $region40
      $region39: #{tpu_custom_call.1} parent=5 // pred_region
        %s216 = ssub.s32 %s14, 1
        %s217 = sand.u32 %s27, 1
        %s218 = scalar_lea.sflag [#allocation3], %s217
        %s219 = sand.u32 %s27, 1
        %s220 = smul.addr %s219, 16
        %s221 = scalar_lea.vmem [#allocation2], %s220
        // Predicated region
        $region41: #{tpu_custom_call.1} parent=39 // pred_check
          %p222 = pneg %p40
        $region42: #{tpu_custom_call.1} parent=39 // pred_check_branch
          %224 = sbr.rel (%p222) target = $region44
        $region43: #{tpu_custom_call.1} parent=39 // pred_region
          %226 = dma.done %s218, 256
        $region44: #{tpu_custom_call.1} parent=39 // pred_fallthru
          _
        %s227 = sand.u32 %s27, 1
        %s228 = scalar_lea.sflag [#allocation3], %s227
        %s229 = sand.u32 %s27, 1
        %s230 = smul.addr %s229, 16
        %s231 = scalar_lea.vmem [#allocation2], %s230
        %p232 = pneg %p40
        %p233 = pneg %p37
        %p234 = pneg %p61
        %p235 = pneg %p58
        %p236 = pneg %p82
        %p237 = pneg %p79
        %p238 = pneg %p103
        %p239 = pneg %p100
        %p240 = pneg %p124
        %p241 = pneg %p121
        %p242 = pneg %p150
        %p243 = pneg %p147
        %s244 = sand.u32 %s137, 1
        %s245 = sand.u32 %s137, 1
        %s246 = smul.addr %s245, 16
        %s247 = scalar_lea.vmem [#allocation4], %s246
        %s248 = smul.u32 2, %s19
        %s249 = ssub.s32 3, %s248
        %p250 = scmp.lt.s32.totalorder %s249, 2
        %s251 = scalar_select %p250, %s249, 2
        %s252 = smul.u32 8, %s251
        %s253 = smul.u32 2, %s19
        %s254 = ssub.s32 3, %s253
        %p255 = scmp.lt.s32.totalorder %s254, 2
        %s256 = scalar_select %p255, %s254, 2
        %s257 = smul.u32 8, %s256
        %v259 = vld [vmem:[%s221] sm:$0xff]
        %v260 = vld [vmem:[%s221 + $0x8] sm:$0xff]
        %v261 = vpack.c.bf16 %v260, %v259
        %v262 = vld [vmem:[%s1] sm:$0xf]
        %v263 = vld [vmem:[%s1 + $0x4] sm:$0xf]
        %v264 = vld [vmem:[%s1 + $0x8] sm:$0xf]
        %v265 = vld [vmem:[%s1 + $0xc] sm:$0xf]
        %v266 = vld [vmem:[%s2] sm:$0x1]
        %v268 = vperm.slane %v266, 0
        %v274 = vunpack.c.l.b16 %v262
        %v275 = vunpack.c.l.b16 %v263
        %v276 = vunpack.c.l.b16 %v264
        %v277 = vunpack.c.l.b16 %v265
        %v278 = vpack.c.b16 %v275, %v274
        %v279 = vpack.c.b16 %v277, %v276
        %vm282 = vcmask 261120
        %v284 = vsel %vm282, %v261, 0
        %286 = vmatpush.bf16.msra.mxu0 0
        %287 = vmatpush.bf16.msra.mxu0 0
        %288 = vmatpush.bf16.msra.mxu0 0
        %289 = vmatpush.bf16.msra.mxu0 0
        %290 = vmatpush.bf16.msra.mxu0 0
        %291 = vmatpush.bf16.msra.mxu0 0
        %292 = vmatpush.bf16.msra.mxu0 %v279
        %293 = vmatpush.bf16.msra.mxu0 %v278
        %294 = vmatmul.bf16.gmra.mxu0 %v284
        %v295 = vpop.f32.mrf.mxu0
        %v296 = vadd.f32 %v268, %v295
        %v297 = vpop.f32.mrf.mxu0
        %v298 = vadd.f32 %v268, %v297
        %299 = vdwg.mxu0
        %v300 = vmax.f32 %v296, 0.0
        %v301 = vmax.f32 %v298, 0.0
        %v302 = vpack.c.bf16 %v301, %v300
        %v303 = vld [vmem:[%s3] sm:$0xf]
        %v304 = vld [vmem:[%s3 + $0x4] sm:$0xf]
        %v305 = vld [vmem:[%s3 + $0x8] sm:$0xf]
        %v306 = vld [vmem:[%s3 + $0xc] sm:$0xf]
        %v307 = vld [vmem:[%s4] sm:$0x1]
        %v309 = vperm.slane %v307, 0
        %v315 = vunpack.c.l.b16 %v303
        %v316 = vunpack.c.l.b16 %v304
        %v317 = vunpack.c.l.b16 %v305
        %v318 = vunpack.c.l.b16 %v306
        %v319 = vpack.c.b16 %v316, %v315
        %v320 = vpack.c.b16 %v318, %v317
        %v324 = vsel %vm282, %v302, 0
        %326 = vmatpush.bf16.msra.mxu0 0
        %327 = vmatpush.bf16.msra.mxu0 0
        %328 = vmatpush.bf16.msra.mxu0 0
        %329 = vmatpush.bf16.msra.mxu0 0
        %330 = vmatpush.bf16.msra.mxu0 0
        %331 = vmatpush.bf16.msra.mxu0 0
        %332 = vmatpush.bf16.msra.mxu0 %v320
        %333 = vmatpush.bf16.msra.mxu0 %v319
        %334 = vmatmul.bf16.gmra.mxu0 %v324
        %v335 = vpop.f32.mrf.mxu0
        %v336 = vadd.f32 %v309, %v335
        %v337 = vpop.f32.mrf.mxu0
        %v338 = vadd.f32 %v309, %v337
        %339 = vdwg.mxu0
        %vm340 = vcmask 64512
        %341 = vst.msk [vmem:[%s247] sm:$0xff] %vm340, %v336
        %342 = vst.msk [vmem:[%s247 + $0x8] sm:$0xff] %vm340, %v338
        %s343 = sand.u32 %s137, 1
        %s344 = sand.u32 %s137, 1
        %s345 = smul.addr %s344, 16
        %s346 = scalar_lea.vmem [#allocation4], %s345
        // Predicated region
        $region45: #{tpu_custom_call.1} parent=39 // pred_check
          %p347 = pneg %p147
        $region46: #{tpu_custom_call.1} parent=39 // pred_check_branch
          %349 = sbr.rel (%p347) target = $region48
        $region47: #{tpu_custom_call.1} parent=39 // pred_region
          %s350 = smul.u32 2, %s19
          %s351 = ssub.s32 3, %s350
          %p352 = scmp.lt.s32.totalorder %s351, 2
          %s353 = scalar_select %p352, %s351, 2
          %s354 = smul.u32 8, %s353
          %p355 = scmp.ne.s32.totalorder 0, %s354
          %s356 = smul.addr %s350, 8
          %s357 = scalar_lea.vmem %s5, %s356
          // Predicated region
          $region49: #{tpu_custom_call.1} parent=47 // pred_check
            %p358 = pneg %p355
          $region50: #{tpu_custom_call.1} parent=47 // pred_check_branch
            %360 = sbr.rel (%p358) target = $region52
          $region51: #{tpu_custom_call.1} parent=47 // pred_region
            // Predicated region
            $region53: #{tpu_custom_call.1} parent=51 // pred_check
              _
            $region54: #{tpu_custom_call.1} parent=51 // pred_check_branch
              %362 = sbr.rel (0) target = $region56
            $region55: #{tpu_custom_call.1} parent=51 // pred_region
              // Predicated region
              $region75: #{tpu_custom_call.1} parent=55 // pred_check
                _
              $region76: #{tpu_custom_call.1} parent=55 // pred_check_branch
                %414 = sbr.rel (0) target = $region78
              $region77: #{tpu_custom_call.1} parent=55 // pred_region
                %s415 = sshrl.u32 %s353, 1
                // While loop
                $region79: #{tpu_custom_call.1} parent=77 // loop_pre_header
                  _
                $region80: #{tpu_custom_call.1} parent=77 // loop_header
                  %s417 = sphi 0, %s419
                  %p418 = scmp.ge.s32.totalorder %s417, %s415
                  %s422 = sphi 0, %s431
                  %s423 = sphi %s346, %s434
                  %s424 = sphi %s357, %s435
                $region81: #{tpu_custom_call.1} parent=77 // loop_header_branch
                  %421 = sbr.rel (%p418) target = $region85
                $region82: #{tpu_custom_call.1} parent=77 // loop_body
                  %v425 = vld [vmem:[%s423] sm:$0xff]
                  %426 = vst [vmem:[%s424] sm:$0xff] %v425
                  %v427 = vld [vmem:[%s423 + $0x8] sm:$0xff]
                  %428 = vst [vmem:[%s424 + $0x8] sm:$0xff] %v427
                  %s429 = sadd.s32 1, %s422
                  %p430 = scmp.ge.s32.totalorder %s429, %s415
                  %s431 = scalar_select %p430, 0, %s429
                  %s432 = smul.u32 %s431, 16
                  %s433 = smul.u32 %s431, 16
                  %s434 = scalar_lea.vmem %s346, %s432 [#allocation4]
                  %s435 = scalar_lea.vmem %s357, %s433
                $region83: #{tpu_custom_call.1} parent=77 // loop_footer
                  %s419 = sadd.s32 %s417, 1
                $region84: #{tpu_custom_call.1} parent=77 // loop_footer_branch
                  %416 = sbr.rel target = $region80
                $region85: #{tpu_custom_call.1} parent=77 // loop_exit
                  _
                %s436 = sshrl.u32 %s353, 1
                %s437 = sand.u32 %s353, 1
                %s438 = smul.u32 %s436, 2
                %s439 = smul.u32 8, %s438
                %s440 = scalar_lea.vmem %s346, %s439 [#allocation4]
                %s441 = smul.u32 8, %s438
                %s442 = scalar_lea.vmem %s357, %s441
                // While loop
                $region86: #{tpu_custom_call.1} parent=77 // loop_pre_header
                  _
                $region87: #{tpu_custom_call.1} parent=77 // loop_header
                  %s444 = sphi 0, %s446
                  %p445 = scmp.ge.s32.totalorder %s444, %s437
                  %s449 = sphi 0, %s456
                  %s450 = sphi %s440, %s459
                  %s451 = sphi %s442, %s460
                $region88: #{tpu_custom_call.1} parent=77 // loop_header_branch
                  %448 = sbr.rel (%p445) target = $region92
                $region89: #{tpu_custom_call.1} parent=77 // loop_body
                  %v452 = vld [vmem:[%s450] sm:$0xff]
                  %453 = vst [vmem:[%s451] sm:$0xff] %v452
                  %s454 = sadd.s32 1, %s449
                  %p455 = scmp.ge.s32.totalorder %s454, %s437
                  %s456 = scalar_select %p455, 0, %s454
                  %s457 = smul.u32 %s456, 8
                  %s458 = smul.u32 %s456, 8
                  %s459 = scalar_lea.vmem %s440, %s457 [#allocation4]
                  %s460 = scalar_lea.vmem %s442, %s458
                $region90: #{tpu_custom_call.1} parent=77 // loop_footer
                  %s446 = sadd.s32 %s444, 1
                $region91: #{tpu_custom_call.1} parent=77 // loop_footer_branch
                  %443 = sbr.rel target = $region87
                $region92: #{tpu_custom_call.1} parent=77 // loop_exit
                  _
              $region78: #{tpu_custom_call.1} parent=55 // pred_fallthru
                _
              // Predicated region
              $region93: #{tpu_custom_call.1} parent=55 // pred_check
                _
              $region94: #{tpu_custom_call.1} parent=55 // pred_check_branch
                %462 = sbr.rel target = $region96
              $region95: #{tpu_custom_call.1} parent=55 // pred_region
                _
              $region96: #{tpu_custom_call.1} parent=55 // pred_fallthru
                _
            $region56: #{tpu_custom_call.1} parent=51 // pred_fallthru
              _
            // Predicated region
            $region57: #{tpu_custom_call.1} parent=51 // pred_check
              _
            $region58: #{tpu_custom_call.1} parent=51 // pred_check_branch
              %364 = sbr.rel target = $region60
            $region59: #{tpu_custom_call.1} parent=51 // pred_region
              %s366 = ssub.s32 256, 1
              %s367 = sshrl.u32 %s353, 1
              // While loop
              $region61: #{tpu_custom_call.1} parent=59 // loop_pre_header
                _
              $region62: #{tpu_custom_call.1} parent=59 // loop_header
                %s369 = sphi 0, %s371
                %p370 = scmp.ge.s32.totalorder %s369, %s367
                %s374 = sphi 0, %s383
                %s375 = sphi %s346, %s386
                %s376 = sphi %s357, %s387
              $region63: #{tpu_custom_call.1} parent=59 // loop_header_branch
                %373 = sbr.rel (%p370) target = $region67
              $region64: #{tpu_custom_call.1} parent=59 // loop_body
                %v377 = vld [vmem:[%s375] sm:%s366]
                %378 = vst [vmem:[%s376] sm:%s366] %v377
                %v379 = vld [vmem:[%s375 + $0x8] sm:%s366]
                %380 = vst [vmem:[%s376 + $0x8] sm:%s366] %v379
                %s381 = sadd.s32 1, %s374
                %p382 = scmp.ge.s32.totalorder %s381, %s367
                %s383 = scalar_select %p382, 0, %s381
                %s384 = smul.u32 %s383, 16
                %s385 = smul.u32 %s383, 16
                %s386 = scalar_lea.vmem %s346, %s384 [#allocation4]
                %s387 = scalar_lea.vmem %s357, %s385
              $region65: #{tpu_custom_call.1} parent=59 // loop_footer
                %s371 = sadd.s32 %s369, 1
              $region66: #{tpu_custom_call.1} parent=59 // loop_footer_branch
                %368 = sbr.rel target = $region62
              $region67: #{tpu_custom_call.1} parent=59 // loop_exit
                _
              %s388 = sshrl.u32 %s353, 1
              %s389 = sand.u32 %s353, 1
              %s390 = smul.u32 %s388, 2
              %s391 = smul.u32 8, %s390
              %s392 = scalar_lea.vmem %s346, %s391 [#allocation4]
              %s393 = smul.u32 8, %s390
              %s394 = scalar_lea.vmem %s357, %s393
              // While loop
              $region68: #{tpu_custom_call.1} parent=59 // loop_pre_header
                _
              $region69: #{tpu_custom_call.1} parent=59 // loop_header
                %s396 = sphi 0, %s398
                %p397 = scmp.ge.s32.totalorder %s396, %s389
                %s401 = sphi 0, %s408
                %s402 = sphi %s392, %s411
                %s403 = sphi %s394, %s412
              $region70: #{tpu_custom_call.1} parent=59 // loop_header_branch
                %400 = sbr.rel (%p397) target = $region74
              $region71: #{tpu_custom_call.1} parent=59 // loop_body
                %v404 = vld [vmem:[%s402] sm:%s366]
                %405 = vst [vmem:[%s403] sm:%s366] %v404
                %s406 = sadd.s32 1, %s401
                %p407 = scmp.ge.s32.totalorder %s406, %s389
                %s408 = scalar_select %p407, 0, %s406
                %s409 = smul.u32 %s408, 8
                %s410 = smul.u32 %s408, 8
                %s411 = scalar_lea.vmem %s392, %s409 [#allocation4]
                %s412 = scalar_lea.vmem %s394, %s410
              $region72: #{tpu_custom_call.1} parent=59 // loop_footer
                %s398 = sadd.s32 %s396, 1
              $region73: #{tpu_custom_call.1} parent=59 // loop_footer_branch
                %395 = sbr.rel target = $region69
              $region74: #{tpu_custom_call.1} parent=59 // loop_exit
                _
            $region60: #{tpu_custom_call.1} parent=51 // pred_fallthru
              _
          $region52: #{tpu_custom_call.1} parent=47 // pred_fallthru
            _
          %463 = vnop
        $region48: #{tpu_custom_call.1} parent=39 // pred_fallthru
          _
      $region40: #{tpu_custom_call.1} parent=5 // pred_fallthru
        _
      %p464 = scmp.le.s32.totalorder 2, %s14
      // Predicated region
      $region97: #{tpu_custom_call.1} parent=5 // pred_check
        %p465 = pneg %p464
      $region98: #{tpu_custom_call.1} parent=5 // pred_check_branch
        %467 = sbr.rel (%p465) target = $region100
      $region99: #{tpu_custom_call.1} parent=5 // pred_region
        %s468 = ssub.s32 %s14, 2
        // Predicated region
        $region101: #{tpu_custom_call.1} parent=99 // pred_check
          %p469 = pneg %p153
        $region102: #{tpu_custom_call.1} parent=99 // pred_check_branch
          %471 = sbr.rel (%p469) target = $region104
        $region103: #{tpu_custom_call.1} parent=99 // pred_region
          %s472 = sand.u32 %s138, 1
          %s473 = sand.u32 %s138, 1
          %s474 = smul.addr %s473, 16
          %s475 = scalar_lea.vmem [#allocation4], %s474
        $region104: #{tpu_custom_call.1} parent=99 // pred_fallthru
          _
      $region100: #{tpu_custom_call.1} parent=5 // pred_fallthru
        _
    $region6: #{tpu_custom_call.1} parent=1 // loop_footer
      %s18 = sadd.s32 1, %s14
    $region7: #{tpu_custom_call.1} parent=1 // loop_footer_branch
      %13 = sbr.rel target = $region3
    $region8: #{tpu_custom_call.1} parent=1 // loop_exit
      _
    %476 = vsyncpa [#allocation3], 1
    %s477 = scalar_lea.sflag [#allocation3], 1
    %478 = vsyncpa %s477, 1

</llo_original>
